<compile_context>
chip_gen: v7x
topology: tpu7x:2x2x1
jax: 0.10.0
libtpu: 0.0.40
codegen_flags: <defaults>
</compile_context>

<pallas_src>
import functools
import math

import jax
import jax.numpy as jnp
import numpy as np
from jax import lax
from jax.experimental import pallas as pl
from jax.experimental.pallas import tpu as pltpu


# --------------------------------------------------------------------------- #
# helpers
# --------------------------------------------------------------------------- #
def _unroll(n: int):
    """Fully unroll short static loops; partially unroll (8) long ones."""
    if n <= 0:
        return 1
    return True if n <= 32 else 8


def _vmem_capacity_bytes() -> int:
    """Physical VMEM of the current chip; conservative 64 MiB fallback."""
    try:
        info = pltpu.get_tpu_info()
        cap = int(getattr(info, "vmem_capacity_bytes", 0) or 0)
        if cap > 0:
            return cap
    except Exception:
        pass
    return 64 * 1024 * 1024


def _pick_seq_tile(seq_len: int, d_model: int, emb_itemsize: int,
                   tile_budget_bytes: int) -> int:
    """Largest multiple-of-8 tile dividing seq_len whose working set fits."""
    # 2x pe (f32) + 2x out (f32) pipeline buffers + rows scratch (table dtype)
    per_row = d_model * (2 * 4 + 2 * 4 + emb_itemsize)
    for ts in (512, 256, 128, 64, 32, 16, 8):
        if ts <= seq_len and seq_len % ts == 0 and ts * per_row <= tile_budget_bytes:
            return ts
    # Fallback for small / awkward sequence lengths: full sequence.
    return seq_len


def make_sinusoid_pe(max_len: int, d_model: int) -> jnp.ndarray:
    """Same construction as PositionalEncodingHubin's registered 'pe' buffer."""
    position = jnp.arange(max_len, dtype=jnp.float32)[:, None]              # (L, 1)
    div_term = jnp.exp(
        jnp.arange(0, d_model, 2, dtype=jnp.float32)
        * -(math.log(10000.0) / d_model))                                   # (D/2,)
    pe = jnp.zeros((max_len, d_model), dtype=jnp.float32)
    pe = pe.at[:, 0::2].set(jnp.sin(position * div_term))
    pe = pe.at[:, 1::2].set(jnp.cos(position * div_term))
    return pe


# --------------------------------------------------------------------------- #
# kernel A: embedding table resident in VMEM (small / medium vocab)
# --------------------------------------------------------------------------- #
def _vmem_table_kernel(ids_ref, emb_ref, pe_ref, out_ref, rows_ref, *,
                       scale, tile_s, seq_len):
    """One grid step == one (sequence tile, batch row).

    ids_ref : SMEM (B*S,) int32       full id array (flattened)
    emb_ref : VMEM (V, D)             full table, fetched once (constant index)
    pe_ref  : VMEM (TS, D) f32        resident across the inner batch axis
    out_ref : VMEM (1, TS, D)
    rows_ref: VMEM (TS, D) scratch    gathered embedding rows
    """
    t = pl.program_id(0)          # sequence tile (outer)
    b = pl.program_id(1)          # batch row (inner)
    base = b * seq_len + t * tile_s

    def gather(s, carry):
        tok = ids_ref[base + s]                                   # SMEM scalar
        rows_ref[pl.ds(s, 1), :] = emb_ref[pl.ds(tok, 1), :]      # VMEM row copy
        return carry

    lax.fori_loop(0, tile_s, gather, 0, unroll=_unroll(tile_s))

    # One dense scale + positional add + lane-dense store for the whole tile.
    out_ref[0, :, :] = (rows_ref[...].astype(jnp.float32) * scale
                        + pe_ref[...]).astype(out_ref.dtype)


# --------------------------------------------------------------------------- #
# kernel B: embedding table stays in HBM, per-row DMA gather with a sem pool
# --------------------------------------------------------------------------- #
def _hbm_gather_kernel(ids_ref, emb_hbm, pe_ref, out_ref, rows_ref, sems, *,
                       scale, tile_s, seq_len, pool):
    """Same step semantics as kernel A, but the (V, D) table never enters VMEM.

    rows are DMA-gathered from HBM with at most `pool` copies in flight,
    reusing `pool` DMA semaphores (issue-K / wait-K software pipeline).
    """
    t = pl.program_id(0)
    b = pl.program_id(1)
    base = b * seq_len + t * tile_s

    def row_copy(s):
        tok = ids_ref[base + s]                       # SMEM scalar read
        return pltpu.make_async_copy(
            emb_hbm.at[pl.ds(tok, 1), :],             # (1, D) row in HBM
            rows_ref.at[pl.ds(s, 1), :],              # (1, D) slot in VMEM
            sems.at[s % pool],
        )

    n_prime = min(pool, tile_s)

    # Prime: put `pool` row copies in flight.
    def prime(s, carry):
        row_copy(s).start()
        return carry
    lax.fori_loop(0, n_prime, prime, 0, unroll=_unroll(n_prime))

    # Steady state: wait row s, immediately issue row s + pool on the same sem.
    if tile_s > n_prime:
        def steady(s, carry):
            row_copy(s).wait()
            row_copy(s + n_prime).start()
            return carry
        lax.fori_loop(0, tile_s - n_prime, steady, 0,
                      unroll=_unroll(tile_s - n_prime))

    # Drain the last `pool` copies.
    def drain(s, carry):
        row_copy(s).wait()
        return carry
    lax.fori_loop(tile_s - n_prime, tile_s, drain, 0, unroll=_unroll(n_prime))

    out_ref[0, :, :] = (rows_ref[...].astype(jnp.float32) * scale
                        + pe_ref[...]).astype(out_ref.dtype)


# --------------------------------------------------------------------------- #
# JAX wrapper
# --------------------------------------------------------------------------- #
def transformer_embedding(ids: jnp.ndarray,
                          emb_table: jnp.ndarray,
                          pe_table: jnp.ndarray,
                          *,
                          out_dtype=jnp.float32,
                          force_hbm_table: bool = False) -> jnp.ndarray:
    """Forward of TransformerEmbedding: pos_emb(tok_emb(ids)), eval-mode dropout."""
    B, S = ids.shape
    V, D = emb_table.shape
    emb_itemsize = jnp.dtype(emb_table.dtype).itemsize

    # ---- generation-aware VMEM budgeting -----------------------------------
    vmem_cap = _vmem_capacity_bytes()                 # 128 MiB v5e/v6e, 64 MiB v7x
    scoped_cap = vmem_cap // 2                        # stay well below physical

    table_vmem_bytes = 2 * V * D * emb_itemsize       # pipeline may double-buffer
    use_vmem_table = (not force_hbm_table) and table_vmem_bytes <= scoped_cap // 2

    tile_budget = scoped_cap - (table_vmem_bytes if use_vmem_table else 0)
    TS = _pick_seq_tile(S, D, emb_itemsize, int(tile_budget * 0.8))
    n_tiles = S // TS
    scale = float(math.sqrt(D))

    rows_bytes = TS * D * emb_itemsize
    tiles_bytes = TS * D * 4 * 4                      # 2x pe + 2x out (f32)
    need = (table_vmem_bytes if use_vmem_table else 0) + tiles_bytes + rows_bytes
    vmem_limit = int(min(max(need + (4 << 20), 32 << 20), vmem_cap - (2 << 20)))

    # ---- inputs --------------------------------------------------------------
    # Clamp ids (refs have no runtime bounds check) and flatten for SMEM.
    ids_flat = jnp.clip(ids.astype(jnp.int32), 0, V - 1).reshape(-1)
    pe_s = pe_table[:S].astype(jnp.float32)           # glue: pe[:seq_len]

    # ---- specs ---------------------------------------------------------------
    # Grid order (n_tiles, B): sequence-tile outer so the PE tile stays
    # VMEM-resident across the inner batch axis.
    grid = (n_tiles, B)
    ids_spec = pl.BlockSpec(memory_space=pltpu.MemorySpace.SMEM)   # whole ids in SMEM
    pe_spec = pl.BlockSpec((TS, D), lambda t, b: (t, 0))           # constant over b
    out_spec = pl.BlockSpec((1, TS, D), lambda t, b: (b, t, 0))

    if use_vmem_table:
        emb_spec = pl.BlockSpec((V, D), lambda t, b: (0, 0))       # fetched once
        kernel = functools.partial(_vmem_table_kernel, scale=scale,
                                   tile_s=TS, seq_len=S)
        scratch = [pltpu.VMEM((TS, D), emb_table.dtype)]
    else:
        pool = max(1, min(16, TS))                                 # sem pool
        emb_spec = pl.BlockSpec(memory_space=pl.ANY)               # stays in HBM
        kernel = functools.partial(_hbm_gather_kernel, scale=scale,
                                   tile_s=TS, seq_len=S, pool=pool)
        scratch = [pltpu.VMEM((TS, D), emb_table.dtype),
                   pltpu.SemaphoreType.DMA((pool,))]

    grid_spec = pltpu.PrefetchScalarGridSpec(
        num_scalar_prefetch=0,
        grid=grid,
        in_specs=[ids_spec, emb_spec, pe_spec],
        out_specs=out_spec,
        scratch_shapes=scratch,
    )

    return pl.pallas_call(
        kernel,
        out_shape=jax.ShapeDtypeStruct((B, S, D), out_dtype),
        grid_spec=grid_spec,
        compiler_params=pltpu.CompilerParams(
            dimension_semantics=("parallel", "parallel"),
            vmem_limit_bytes=vmem_limit),
    )(ids_flat, emb_table, pe_s)


# --------------------------------------------------------------------------- #
# main
# --------------------------------------------------------------------------- #
if __name__ == "__main__":
    # small shapes consistent with the module's forward
    d_model, vocab_size, max_len, dropout_prob = 32, 64, 16, 0.1
    batch, seq_len = 2, 8

    key = jax.random.PRNGKey(0)
    k_ids, k_emb = jax.random.split(key)

    # deterministic "parameters": nn.Embedding default init ~ N(0, 1)
    emb_table = jax.random.normal(k_emb, (vocab_size, d_model), dtype=jnp.float32)
    pe_table = make_sinusoid_pe(max_len, d_model)

    # deterministic input token ids
    ids = jax.random.randint(k_ids, (batch, seq_len), 0, vocab_size, dtype=jnp.int32)

    # pure-JAX reference
    ref = (jnp.take(emb_table, ids, axis=0) * math.sqrt(d_model)
           + pe_table[:seq_len][None])

    # Path A: table staged in VMEM (auto-selected for this small vocab).
    out_vmem = jax.block_until_ready(transformer_embedding(ids, emb_table, pe_table))
    np.testing.assert_allclose(np.asarray(out_vmem), np.asarray(ref),
                               rtol=1e-5, atol=1e-5)

    # Path B: table kept in HBM, per-row DMA gather through the semaphore pool.
    out_hbm = jax.block_until_ready(
        transformer_embedding(ids, emb_table, pe_table, force_hbm_table=True))
    np.testing.assert_allclose(np.asarray(out_hbm), np.asarray(ref),
                               rtol=1e-5, atol=1e-5)

    print("KERNEL_OK")
</pallas_src>

<mosaic_0001>
module attributes {stable_mosaic.version = 11 : i64} {
  func.func @_vmem_table_kernel(%arg0: i32, %arg1: i32, %arg2: memref<16xi32, #tpu.memory_space<smem>>, %arg3: memref<64x32xf32, #tpu.memory_space<vmem>>, %arg4: memref<8x32xf32, #tpu.memory_space<vmem>>, %arg5: memref<1x8x32xf32, #tpu.memory_space<vmem>>, %arg6: memref<8x32xf32, #tpu.memory_space<vmem>>) attributes {dimension_semantics = [#tpu.dimension_semantics<parallel>, #tpu.dimension_semantics<parallel>], iteration_bounds = array<i64: 1, 2>, scalar_prefetch = 0 : i64, scratch_operands = 1 : i64, tpu.core_type = #tpu.core_type<tc>, window_params = [{transform_indices = @transform_0, window_bounds = array<i64: 16>}, {pipeline_mode = #tpu.pipeline_mode<synchronous>, transform_indices = @transform_1, window_bounds = array<i64: 64, 32>}, {transform_indices = @transform_2, window_bounds = array<i64: 8, 32>}, {transform_indices = @transform_3, window_bounds = array<i64: 1, 8, 32>}]} {
    %c8_i32 = arith.constant 8 : i32
    %0 = arith.muli %arg1, %c8_i32 : i32
    %c8_i32_0 = arith.constant 8 : i32
    %1 = arith.muli %arg0, %c8_i32_0 : i32
    %2 = arith.addi %0, %1 : i32
    %c0_i32 = arith.constant 0 : i32
    %3 = arith.addi %2, %c0_i32 : i32
    %4 = arith.index_cast %3 : i32 to index
    %5 = memref.load %arg2[%4] : memref<16xi32, #tpu.memory_space<smem>>
    %6 = arith.index_cast %5 : i32 to index
    %c0 = arith.constant 0 : index
    %7 = vector.load %arg3[%6, %c0] : memref<64x32xf32, #tpu.memory_space<vmem>>, vector<1x32xf32>
    %8 = arith.index_cast %c0_i32 : i32 to index
    %c0_1 = arith.constant 0 : index
    %9 = vector.load %arg6[%8, %c0_1] : memref<8x32xf32, #tpu.memory_space<vmem>>, vector<1x32xf32>
    tpu.vector_store %arg6[%8, %c0_1], %7 {strides = array<i32>} : memref<8x32xf32, #tpu.memory_space<vmem>>, vector<1x32xf32>,
    %c1_i32 = arith.constant 1 : i32
    %10 = arith.addi %2, %c1_i32 : i32
    %11 = arith.index_cast %10 : i32 to index
    %12 = memref.load %arg2[%11] : memref<16xi32, #tpu.memory_space<smem>>
    %13 = arith.index_cast %12 : i32 to index
    %c0_2 = arith.constant 0 : index
    %14 = vector.load %arg3[%13, %c0_2] : memref<64x32xf32, #tpu.memory_space<vmem>>, vector<1x32xf32>
    %15 = arith.index_cast %c1_i32 : i32 to index
    %c0_3 = arith.constant 0 : index
    %16 = vector.load %arg6[%15, %c0_3] : memref<8x32xf32, #tpu.memory_space<vmem>>, vector<1x32xf32>
    tpu.vector_store %arg6[%15, %c0_3], %14 {strides = array<i32>} : memref<8x32xf32, #tpu.memory_space<vmem>>, vector<1x32xf32>,
    %c2_i32 = arith.constant 2 : i32
    %17 = arith.addi %2, %c2_i32 : i32
    %18 = arith.index_cast %17 : i32 to index
    %19 = memref.load %arg2[%18] : memref<16xi32, #tpu.memory_space<smem>>
    %20 = arith.index_cast %19 : i32 to index
    %c0_4 = arith.constant 0 : index
    %21 = vector.load %arg3[%20, %c0_4] : memref<64x32xf32, #tpu.memory_space<vmem>>, vector<1x32xf32>
    %22 = arith.index_cast %c2_i32 : i32 to index
    %c0_5 = arith.constant 0 : index
    %23 = vector.load %arg6[%22, %c0_5] : memref<8x32xf32, #tpu.memory_space<vmem>>, vector<1x32xf32>
    tpu.vector_store %arg6[%22, %c0_5], %21 {strides = array<i32>} : memref<8x32xf32, #tpu.memory_space<vmem>>, vector<1x32xf32>,
    %c3_i32 = arith.constant 3 : i32
    %24 = arith.addi %2, %c3_i32 : i32
    %25 = arith.index_cast %24 : i32 to index
    %26 = memref.load %arg2[%25] : memref<16xi32, #tpu.memory_space<smem>>
    %27 = arith.index_cast %26 : i32 to index
    %c0_6 = arith.constant 0 : index
    %28 = vector.load %arg3[%27, %c0_6] : memref<64x32xf32, #tpu.memory_space<vmem>>, vector<1x32xf32>
    %29 = arith.index_cast %c3_i32 : i32 to index
    %c0_7 = arith.constant 0 : index
    %30 = vector.load %arg6[%29, %c0_7] : memref<8x32xf32, #tpu.memory_space<vmem>>, vector<1x32xf32>
    tpu.vector_store %arg6[%29, %c0_7], %28 {strides = array<i32>} : memref<8x32xf32, #tpu.memory_space<vmem>>, vector<1x32xf32>,
    %c4_i32 = arith.constant 4 : i32
    %31 = arith.addi %2, %c4_i32 : i32
    %32 = arith.index_cast %31 : i32 to index
    %33 = memref.load %arg2[%32] : memref<16xi32, #tpu.memory_space<smem>>
    %34 = arith.index_cast %33 : i32 to index
    %c0_8 = arith.constant 0 : index
    %35 = vector.load %arg3[%34, %c0_8] : memref<64x32xf32, #tpu.memory_space<vmem>>, vector<1x32xf32>
    %36 = arith.index_cast %c4_i32 : i32 to index
    %c0_9 = arith.constant 0 : index
    %37 = vector.load %arg6[%36, %c0_9] : memref<8x32xf32, #tpu.memory_space<vmem>>, vector<1x32xf32>
    tpu.vector_store %arg6[%36, %c0_9], %35 {strides = array<i32>} : memref<8x32xf32, #tpu.memory_space<vmem>>, vector<1x32xf32>,
    %c5_i32 = arith.constant 5 : i32
    %38 = arith.addi %2, %c5_i32 : i32
    %39 = arith.index_cast %38 : i32 to index
    %40 = memref.load %arg2[%39] : memref<16xi32, #tpu.memory_space<smem>>
    %41 = arith.index_cast %40 : i32 to index
    %c0_10 = arith.constant 0 : index
    %42 = vector.load %arg3[%41, %c0_10] : memref<64x32xf32, #tpu.memory_space<vmem>>, vector<1x32xf32>
    %43 = arith.index_cast %c5_i32 : i32 to index
    %c0_11 = arith.constant 0 : index
    %44 = vector.load %arg6[%43, %c0_11] : memref<8x32xf32, #tpu.memory_space<vmem>>, vector<1x32xf32>
    tpu.vector_store %arg6[%43, %c0_11], %42 {strides = array<i32>} : memref<8x32xf32, #tpu.memory_space<vmem>>, vector<1x32xf32>,
    %c6_i32 = arith.constant 6 : i32
    %45 = arith.addi %2, %c6_i32 : i32
    %46 = arith.index_cast %45 : i32 to index
    %47 = memref.load %arg2[%46] : memref<16xi32, #tpu.memory_space<smem>>
    %48 = arith.index_cast %47 : i32 to index
    %c0_12 = arith.constant 0 : index
    %49 = vector.load %arg3[%48, %c0_12] : memref<64x32xf32, #tpu.memory_space<vmem>>, vector<1x32xf32>
    %50 = arith.index_cast %c6_i32 : i32 to index
    %c0_13 = arith.constant 0 : index
    %51 = vector.load %arg6[%50, %c0_13] : memref<8x32xf32, #tpu.memory_space<vmem>>, vector<1x32xf32>
    tpu.vector_store %arg6[%50, %c0_13], %49 {strides = array<i32>} : memref<8x32xf32, #tpu.memory_space<vmem>>, vector<1x32xf32>,
    %c7_i32 = arith.constant 7 : i32
    %52 = arith.addi %2, %c7_i32 : i32
    %53 = arith.index_cast %52 : i32 to index
    %54 = memref.load %arg2[%53] : memref<16xi32, #tpu.memory_space<smem>>
    %55 = arith.index_cast %54 : i32 to index
    %c0_14 = arith.constant 0 : index
    %56 = vector.load %arg3[%55, %c0_14] : memref<64x32xf32, #tpu.memory_space<vmem>>, vector<1x32xf32>
    %57 = arith.index_cast %c7_i32 : i32 to index
    %c0_15 = arith.constant 0 : index
    %58 = vector.load %arg6[%57, %c0_15] : memref<8x32xf32, #tpu.memory_space<vmem>>, vector<1x32xf32>
    tpu.vector_store %arg6[%57, %c0_15], %56 {strides = array<i32>} : memref<8x32xf32, #tpu.memory_space<vmem>>, vector<1x32xf32>,
    %c8_i32_16 = arith.constant 8 : i32
    %c0_17 = arith.constant 0 : index
    %c0_18 = arith.constant 0 : index
    %59 = vector.load %arg6[%c0_17, %c0_18] : memref<8x32xf32, #tpu.memory_space<vmem>>, vector<8x32xf32>
    %cst = arith.constant 5.65685415 : f32
    %60 = vector.broadcast %cst : f32 to vector<8x32xf32>
    %61 = arith.mulf %59, %60 : vector<8x32xf32>
    %c0_19 = arith.constant 0 : index
    %c0_20 = arith.constant 0 : index
    %62 = vector.load %arg4[%c0_19, %c0_20] : memref<8x32xf32, #tpu.memory_space<vmem>>, vector<8x32xf32>
    %63 = arith.addf %61, %62 : vector<8x32xf32>
    %c0_21 = arith.constant 0 : index
    %c0_22 = arith.constant 0 : index
    %c0_23 = arith.constant 0 : index
    %64 = vector.load %arg5[%c0_21, %c0_22, %c0_23] : memref<1x8x32xf32, #tpu.memory_space<vmem>>, vector<1x8x32xf32>
    %65 = vector.shape_cast %64 : vector<1x8x32xf32> to vector<8x32xf32>
    %66 = vector.shape_cast %63 : vector<8x32xf32> to vector<1x8x32xf32>
    tpu.vector_store %arg5[%c0_21, %c0_22, %c0_23], %66 {strides = array<i32>} : memref<1x8x32xf32, #tpu.memory_space<vmem>>, vector<1x8x32xf32>,
    return
  }
  func.func @transform_0(%arg0: i32, %arg1: i32) -> i32 {
    %c0_i32 = arith.constant 0 : i32
    %c0_i32_0 = arith.constant 0 : i32
    return %c0_i32 : i32
  }
  func.func @transform_1(%arg0: i32, %arg1: i32) -> (i32, i32) {
    %c0_i32 = arith.constant 0 : i32
    %c0_i32_0 = arith.constant 0 : i32
    %c0_i32_1 = arith.constant 0 : i32
    return %c0_i32, %c0_i32_0 : i32, i32
  }
  func.func @transform_2(%arg0: i32, %arg1: i32) -> (i32, i32) {
    %c0_i32 = arith.constant 0 : i32
    %c0_i32_0 = arith.constant 0 : i32
    return %arg0, %c0_i32 : i32, i32
  }
  func.func @transform_3(%arg0: i32, %arg1: i32) -> (i32, i32, i32) {
    %c0_i32 = arith.constant 0 : i32
    %c0_i32_0 = arith.constant 0 : i32
    return %arg1, %arg0, %c0_i32 : i32, i32, i32
  }
}

</mosaic_0001>

<llo_original>
// kernel: tpu_custom_call.1
$region0: #{tpu_custom_call.1}
  #allocation0 [shape = 'u32[]', space=smem, size = 0x4, offset = 0x4, fixed_abs, tag = 'smem constant byte address 0x4 - core index']
  #allocation1 [shape = 'u32[144,128]{1,0:T(1,128)}', space=vmem, size = 0x12000, scoped, tag = 'internal scratch']
  #allocation2 [shape = 'f32[8,32]{1,0:T(8,128)}', space=vmem, size = 0x1000, scoped, tag = 'scratch operand']
  %s0 = inlined_call_operand.vmem [shape: s32[16], index: 0, kind: input, shape index: {}]
  %s1 = inlined_call_operand.vmem [shape: f32[64,32], index: 1, kind: input, shape index: {}]
  %s2 = inlined_call_operand.vmem [shape: f32[8,32], index: 2, kind: input, shape index: {}]
  %s3 = inlined_call_operand.hbm [shape: f32[2,8,32], index: 3, kind: output, shape index: {}]
  %s4 = sld [smem:[#allocation0]]
  $region49: #{tpu_custom_call.1} parent=0
    _
  %s6 = ssub.s32 1, %s4
  %s7 = scalar_select 0, %s6, %s4
  $region1: #{tpu_custom_call.1} parent=0
    #allocation3 [shape = 'u8[512]{0}', space=smem, size = 0x200, scoped, tag = 'input window, operand 0, single buffered']
    #allocation4 [shape = 's32[2]{0}', space=sflag, size = 0x8, scoped, tag = 'scoped memory for tpu_custom_call.1']
    #allocation5 [shape = 's32[2]{0}', space=sflag, size = 0x8, scoped, tag = 'scoped memory for tpu_custom_call.1']
    #allocation6 [shape = 'u8[8192]{0}', space=vmem, size = 0x2000, scoped, tag = 'output window, operand 0']
    %8 = vsyncpa [#allocation5], 0
    %9 = vsyncpa [#allocation4], 0
    %s10 = scalar_lea.sflag [#allocation4], 1
    %11 = vsyncpa %s10, 0
    loop: start=0, step=1, limit=4
    $region2: #{tpu_custom_call.1} parent=1 // loop_pre_header
      _
    $region3: #{tpu_custom_call.1} parent=1 // loop_header
      %s13 = sphi 0, %s17
      %p14 = scmp.ge.s32.totalorder %s13, 4
      %s20 = sphi 0, %s32
      %s21 = sphi 0, %s28
      %s22 = sphi 0, %s20
      %s23 = sphi 0, %s21
      %s24 = sphi 0, %s22
      %s25 = sphi 0, %s23
      %s33 = sphi 0, %s33
      %s35 = sphi 0, %s33
      %s36 = sphi 0, %s35
      %s50 = sphi 0, %s36
      %s54 = sphi 0, %s54
      %s56 = sphi 0, %s54
      %s57 = sphi 0, %s56
      %s71 = sphi 0, %s57
      %s77 = sphi 0, %s79
      %s80 = sphi 0, %s77
      %s81 = sphi 0, %s80
      %s97 = sphi 0, %s81
      %s105 = sphi 0, %s107
      %s108 = sphi 0, %s105
      %s109 = sphi 0, %s108
      %s125 = sphi 0, %s109
    $region4: #{tpu_custom_call.1} parent=1 // loop_header_branch
      %16 = sbr.rel (%p14) target = $region8
    $region5: #{tpu_custom_call.1} parent=1 // loop_body
      %s18 = ssub.s32 %s13, 1
      %s19 = ssub.s32 %s13, 2
      %s26 = sadd.s32 1, %s21
      %p27 = scmp.ge.s32.totalorder %s26, 2
      %s28 = scalar_select %p27, 0, %s26
      %s29 = sadd.s32 1, %s20
      %s30 = scalar_select %p27, %s29, %s20
      %p31 = scmp.ge.s32.totalorder %s30, 1
      %s32 = scalar_select %p31, 0, %s30
      %s34 = sadd.s32 %s33, 1
      %p37 = scmp.eq.s32.totalorder %s13, 1
      %p38 = scmp.ne.s32.totalorder %s33, %s35
      %p39 = scmp.eq.s32.totalorder %s13, 0
      %p40 = por %p38, %p39
      %p41 = scmp.ne.s32.totalorder %s33, %s35
      %p42 = scmp.eq.s32.totalorder %s18, 1
      %p43 = por %p41, %p42
      %p44 = scmp.ne.s32.totalorder %s35, %s36
      %p45 = scmp.eq.s32.totalorder %s18, 0
      %p46 = por %p44, %p45
      %p47 = scmp.ne.s32.totalorder %s35, %s36
      %p48 = scmp.eq.s32.totalorder %s19, 1
      %p49 = por %p47, %p48
      %p51 = scmp.ne.s32.totalorder %s36, %s50
      %p52 = scmp.eq.s32.totalorder %s19, 0
      %p53 = por %p51, %p52
      %s55 = sadd.s32 %s54, 1
      %p58 = scmp.eq.s32.totalorder %s13, 1
      %p59 = scmp.ne.s32.totalorder %s54, %s56
      %p60 = scmp.eq.s32.totalorder %s13, 0
      %p61 = por %p59, %p60
      %p62 = scmp.ne.s32.totalorder %s54, %s56
      %p63 = scmp.eq.s32.totalorder %s18, 1
      %p64 = por %p62, %p63
      %p65 = scmp.ne.s32.totalorder %s56, %s57
      %p66 = scmp.eq.s32.totalorder %s18, 0
      %p67 = por %p65, %p66
      %p68 = scmp.ne.s32.totalorder %s56, %s57
      %p69 = scmp.eq.s32.totalorder %s19, 1
      %p70 = por %p68, %p69
      %p72 = scmp.ne.s32.totalorder %s57, %s71
      %p73 = scmp.eq.s32.totalorder %s19, 0
      %p74 = por %p72, %p73
      %s75 = ssub.s32 %s20, %s32
      %p76 = scmp.eq.s32.totalorder %s75, 0
      %s78 = sadd.s32 %s77, 1
      %s79 = scalar_select %p76, %s77, %s78
      %p82 = pneg %p76
      %p83 = scmp.eq.s32.totalorder %s13, 1
      %p84 = por %p82, %p83
      %p85 = scmp.ne.s32.totalorder %s77, %s80
      %p86 = scmp.eq.s32.totalorder %s13, 0
      %p87 = por %p85, %p86
      %p88 = scmp.ne.s32.totalorder %s77, %s80
      %p89 = scmp.eq.s32.totalorder %s18, 1
      %p90 = por %p88, %p89
      %p91 = scmp.ne.s32.totalorder %s80, %s81
      %p92 = scmp.eq.s32.totalorder %s18, 0
      %p93 = por %p91, %p92
      %p94 = scmp.ne.s32.totalorder %s80, %s81
      %p95 = scmp.eq.s32.totalorder %s19, 1
      %p96 = por %p94, %p95
      %p98 = scmp.ne.s32.totalorder %s81, %s97
      %p99 = scmp.eq.s32.totalorder %s19, 0
      %p100 = por %p98, %p99
      %s101 = ssub.s32 %s21, %s28
      %s102 = ssub.s32 %s20, %s32
      %s103 = sor.u32 %s101, %s102
      %p104 = scmp.eq.s32.totalorder %s103, 0
      %s106 = sadd.s32 %s105, 1
      %s107 = scalar_select %p104, %s105, %s106
      %p110 = pneg %p104
      %p111 = scmp.eq.s32.totalorder %s13, 1
      %p112 = por %p110, %p111
      %p113 = scmp.ne.s32.totalorder %s105, %s108
      %p114 = scmp.eq.s32.totalorder %s13, 0
      %p115 = por %p113, %p114
      %p116 = scmp.ne.s32.totalorder %s105, %s108
      %p117 = scmp.eq.s32.totalorder %s18, 1
      %p118 = por %p116, %p117
      %p119 = scmp.ne.s32.totalorder %s108, %s109
      %p120 = scmp.eq.s32.totalorder %s18, 0
      %p121 = por %p119, %p120
      %p122 = scmp.ne.s32.totalorder %s108, %s109
      %p123 = scmp.eq.s32.totalorder %s19, 1
      %p124 = por %p122, %p123
      %p126 = scmp.ne.s32.totalorder %s109, %s125
      %p127 = scmp.eq.s32.totalorder %s19, 0
      %p128 = por %p126, %p127
      %p129 = scmp.le.s32.totalorder 1, %s13
      %p130 = scmp.lt.s32.totalorder %s13, 3
      %p131 = pnand %p129, %p130
      %p132 = pneg %p131
      // Predicated region
      $region9: #{tpu_custom_call.1} parent=5 // pred_check
        _
      $region10: #{tpu_custom_call.1} parent=5 // pred_check_branch
        %134 = sbr.rel (%p131) target = $region12
      $region11: #{tpu_custom_call.1} parent=5 // pred_region
        %s135 = ssub.s32 %s13, 1
        // Predicated region
        $region13: #{tpu_custom_call.1} parent=11 // pred_check
          %p136 = pneg %p46
        $region14: #{tpu_custom_call.1} parent=11 // pred_check_branch
          %138 = sbr.rel (%p136) target = $region16
        $region15: #{tpu_custom_call.1} parent=11 // pred_region
          %s140 = ssub.s32 16, 16
          %141 = vsyncadd [#allocation5], %s140
          %s143 = sshll.u32 %s0, 4
          %s144 = int_to_ptr.vmem [resolvable:$true] %s143
          %146 = dma.vmem_to_smem %s144, 16, [#allocation3], [#allocation5]
        $region16: #{tpu_custom_call.1} parent=11 // pred_fallthru
          _
        // Predicated region
        $region17: #{tpu_custom_call.1} parent=11 // pred_check
          %p147 = pneg %p67
        $region18: #{tpu_custom_call.1} parent=11 // pred_check_branch
          %149 = sbr.rel (%p147) target = $region20
        $region19: #{tpu_custom_call.1} parent=11 // pred_region
          _
        $region20: #{tpu_custom_call.1} parent=11 // pred_fallthru
          _
        // Predicated region
        $region21: #{tpu_custom_call.1} parent=11 // pred_check
          %p150 = pneg %p93
        $region22: #{tpu_custom_call.1} parent=11 // pred_check_branch
          %152 = sbr.rel (%p150) target = $region24
        $region23: #{tpu_custom_call.1} parent=11 // pred_region
          %p153 = scmp.lt.s32.totalorder %s22, 0
          %s154 = scalar_select %p153, %s22, 0
          %s155 = smul.addr %s154, 8
          %s156 = scalar_lea.vmem %s2, %s155
        $region24: #{tpu_custom_call.1} parent=11 // pred_fallthru
          _
      $region12: #{tpu_custom_call.1} parent=5 // pred_fallthru
        _
      %p157 = scmp.lt.s32.totalorder %s13, 2
      // Predicated region
      $region25: #{tpu_custom_call.1} parent=5 // pred_check
        %p158 = pneg %p157
      $region26: #{tpu_custom_call.1} parent=5 // pred_check_branch
        %160 = sbr.rel (%p158) target = $region28
      $region27: #{tpu_custom_call.1} parent=5 // pred_region
        _
      $region28: #{tpu_custom_call.1} parent=5 // pred_fallthru
        _
      %p161 = scmp.le.s32.totalorder 1, %s13
      %p162 = scmp.lt.s32.totalorder %s13, 3
      %p163 = pnand %p161, %p162
      %p164 = pneg %p163
      // Predicated region
      $region29: #{tpu_custom_call.1} parent=5 // pred_check
        _
      $region30: #{tpu_custom_call.1} parent=5 // pred_check_branch
        %166 = sbr.rel (%p163) target = $region32
      $region31: #{tpu_custom_call.1} parent=5 // pred_region
        %s167 = ssub.s32 %s13, 1
        // Predicated region
        $region33: #{tpu_custom_call.1} parent=31 // pred_check
          %p168 = pneg %p46
        $region34: #{tpu_custom_call.1} parent=31 // pred_check_branch
          %170 = sbr.rel (%p168) target = $region36
        $region35: #{tpu_custom_call.1} parent=31 // pred_region
          %171 = dma.done [#allocation5], 16
        $region36: #{tpu_custom_call.1} parent=31 // pred_fallthru
          _
        %172 = sfence
        %p173 = pneg %p46
        %p174 = pneg %p43
        %p175 = pneg %p67
        %p176 = pneg %p64
        %p177 = scmp.lt.s32.totalorder %s22, 0
        %s178 = scalar_select %p177, %s22, 0
        %s179 = smul.addr %s178, 8
        %s180 = scalar_lea.vmem %s2, %s179
        %p181 = pneg %p93
        %p182 = pneg %p90
        %p183 = pneg %p121
        %p184 = pneg %p118
        %s185 = sand.u32 %s108, 1
        %s186 = scalar_lea.sflag [#allocation4], %s185
        %s187 = sand.u32 %s108, 1
        %s188 = smul.addr %s187, 8
        %s189 = scalar_lea.vmem [#allocation6], %s188
        %p190 = scmp.lt.s32.totalorder %s22, 0
        %s191 = scalar_select %p190, %s22, 0
        %s192 = smul.addr %s191, 8
        %s193 = scalar_lea.vmem %s2, %s192
        %s194 = smul.u32 %s23, 8
        %s195 = smul.u32 %s22, 8
        %s196 = sadd.s32 %s194, %s195
        %s197 = sld [smem:[#allocation3 + %s196]]
        %s198 = scalar_lea.vmem %s1, %s197
        %v199 = vld [vmem:[%s198] sm:$0x1]
        %vm200 = vcmask 253952
        %201 = vst.msk [vmem:[#allocation2] sm:$0x1] %vm200, %v199
        %s202 = sadd.s32 %s196, 1
        %s203 = sld [smem:[#allocation3 + %s202]]
        %s204 = scalar_lea.vmem %s1, %s203
        %v205 = vld [vmem:[%s204] sm:$0x1]
        %206 = vst.msk [vmem:[#allocation2 + $0x1] sm:$0x1] %vm200, %v205
        %s207 = sadd.s32 %s196, 2
        %s208 = sld [smem:[#allocation3 + %s207]]
        %s209 = scalar_lea.vmem %s1, %s208
        %v210 = vld [vmem:[%s209] sm:$0x1]
        %211 = vst.msk [vmem:[#allocation2 + $0x2] sm:$0x1] %vm200, %v210
        %s212 = sadd.s32 %s196, 3
        %s213 = sld [smem:[#allocation3 + %s212]]
        %s214 = scalar_lea.vmem %s1, %s213
        %v215 = vld [vmem:[%s214] sm:$0x1]
        %216 = vst.msk [vmem:[#allocation2 + $0x3] sm:$0x1] %vm200, %v215
        %s217 = sadd.s32 %s196, 4
        %s218 = sld [smem:[#allocation3 + %s217]]
        %s219 = scalar_lea.vmem %s1, %s218
        %v220 = vld [vmem:[%s219] sm:$0x1]
        %221 = vst.msk [vmem:[#allocation2 + $0x4] sm:$0x1] %vm200, %v220
        %s222 = sadd.s32 %s196, 5
        %s223 = sld [smem:[#allocation3 + %s222]]
        %s224 = scalar_lea.vmem %s1, %s223
        %v225 = vld [vmem:[%s224] sm:$0x1]
        %226 = vst.msk [vmem:[#allocation2 + $0x5] sm:$0x1] %vm200, %v225
        %s227 = sadd.s32 %s196, 6
        %s228 = sld [smem:[#allocation3 + %s227]]
        %s229 = scalar_lea.vmem %s1, %s228
        %v230 = vld [vmem:[%s229] sm:$0x1]
        %231 = vst.msk [vmem:[#allocation2 + $0x6] sm:$0x1] %vm200, %v230
        %s232 = sadd.s32 %s196, 7
        %s233 = sld [smem:[#allocation3 + %s232]]
        %s234 = scalar_lea.vmem %s1, %s233
        %v235 = vld [vmem:[%s234] sm:$0x1]
        %236 = vst.msk [vmem:[#allocation2 + $0x7] sm:$0x1] %vm200, %v235
        %v237 = vld [vmem:[#allocation2] sm:$0xff]
        %v238 = vmul.f32 %v237, 5.656854
        %v239 = vld [vmem:[%s193] sm:$0xff]
        %v240 = vadd.f32 %v238, %v239
        %vm241 = vcmask 261120
        %242 = vst.msk [vmem:[%s189] sm:$0xff] %vm241, %v240
        %s243 = sand.u32 %s108, 1
        %s244 = scalar_lea.sflag [#allocation4], %s243
        %s245 = sand.u32 %s108, 1
        %s246 = smul.addr %s245, 8
        %s247 = scalar_lea.vmem [#allocation6], %s246
        // Predicated region
        $region37: #{tpu_custom_call.1} parent=31 // pred_check
          %p248 = pneg %p118
        $region38: #{tpu_custom_call.1} parent=31 // pred_check_branch
          %250 = sbr.rel (%p248) target = $region40
        $region39: #{tpu_custom_call.1} parent=31 // pred_region
          %s252 = ssub.s32 128, 128
          %253 = vsyncadd %s244, %s252
          %s254 = sadd.s32 %s22, %s23
          %s255 = smul.addr %s254, 128
          %s256 = scalar_lea.hbm %s3, %s255
          %s258 = sshll.u32 %s247, 4
          %s259 = int_to_ptr.vmem [resolvable:$true] %s258
          %261 = dma.vmem_to_hbm [thread:$0]  %s259, 128, %s256, %s244
        $region40: #{tpu_custom_call.1} parent=31 // pred_fallthru
          _
      $region32: #{tpu_custom_call.1} parent=5 // pred_fallthru
        _
      %p262 = scmp.le.s32.totalorder 2, %s13
      // Predicated region
      $region41: #{tpu_custom_call.1} parent=5 // pred_check
        %p263 = pneg %p262
      $region42: #{tpu_custom_call.1} parent=5 // pred_check_branch
        %265 = sbr.rel (%p263) target = $region44
      $region43: #{tpu_custom_call.1} parent=5 // pred_region
        %s266 = ssub.s32 %s13, 2
        // Predicated region
        $region45: #{tpu_custom_call.1} parent=43 // pred_check
          %p267 = pneg %p124
        $region46: #{tpu_custom_call.1} parent=43 // pred_check_branch
          %269 = sbr.rel (%p267) target = $region48
        $region47: #{tpu_custom_call.1} parent=43 // pred_region
          %s270 = sand.u32 %s109, 1
          %s271 = scalar_lea.sflag [#allocation4], %s270
          %s272 = sand.u32 %s109, 1
          %s273 = smul.addr %s272, 8
          %s274 = scalar_lea.vmem [#allocation6], %s273
          %275 = dma.done %s271, 128
        $region48: #{tpu_custom_call.1} parent=43 // pred_fallthru
          _
      $region44: #{tpu_custom_call.1} parent=5 // pred_fallthru
        _
    $region6: #{tpu_custom_call.1} parent=1 // loop_footer
      %s17 = sadd.s32 1, %s13
    $region7: #{tpu_custom_call.1} parent=1 // loop_footer_branch
      %12 = sbr.rel target = $region3
    $region8: #{tpu_custom_call.1} parent=1 // loop_exit
      _
    %276 = vsyncpa [#allocation4], 1
    %s277 = scalar_lea.sflag [#allocation4], 1
    %278 = vsyncpa %s277, 1
    %279 = vsyncpa [#allocation5], 1
    %s280 = scalar_lea.sflag [#allocation5], 1
    %281 = vsyncpa %s280, 1

</llo_original>
